<compile_context>
chip_gen: v7x
topology: tpu7x:2x2x1
jax: 0.10.0
libtpu: 0.0.40
codegen_flags: <defaults>
</compile_context>

<pallas_src>
import functools

import numpy as np
import jax
import jax.numpy as jnp
from jax import lax
from jax.experimental import pallas as pl
from jax.experimental.pallas import tpu as pltpu

# Deterministic EdgeConv weight (exactly what EdgeConv.__init__ sets).
_SOBEL = np.array([[-1.0, -1.0, -1.0],
                   [-1.0,  8.0, -1.0],
                   [-1.0, -1.0, -1.0]], dtype=np.float32)


def _bce_bd_block_kernel(out_ref, tgt_ref, res_ref, *, binary_target):
    """One grid step: a (bn, H, W) block of images -> two partial sums.

    res_ref is a (1, 8, 128) f32 tile; lane 0 holds the BCE partial sum and
    lane 1 the boundary (edge-MSE numerator) partial sum.
    """
    o = out_ref[...].astype(jnp.float32)   # upcast right after load (bf16 ok)
    t = tgt_ref[...].astype(jnp.float32)
    bn, H, W = o.shape

    # ---- BCE partial sum (nn.BCELoss clamps log() at -100; the 'mean'
    #      normalization happens in the wrapper finalize) --------------------
    if binary_target:
        # Exact for 0/1 targets: one log per element (EUP has a single slot).
        p = jnp.where(t > 0.5, o, 1.0 - o)
        bce = -jnp.maximum(jnp.log(p), -100.0)
    else:
        log_o = jnp.maximum(jnp.log(o), -100.0)
        log_1mo = jnp.maximum(jnp.log(1.0 - o), -100.0)
        bce = -(t * log_o + (1.0 - t) * log_1mo)
    bce_sum = jnp.sum(bce)

    # ---- boundary partial sum ---------------------------------------------
    # edge(o) - edge(t) == edge(o - t) (the conv is linear, bias=False), and
    # sobel(x) = 9*x - box3x3(x) with zero padding; box3x3 separates into a
    # row (sublane) pass and a lane pass. Shifts are circular pltpu.roll (XLU,
    # shift >= 0 only) with the wrapped row/column zeroed by a multiplicative
    # (1, H, W) mask that is shared across the block's batch dim, so the mask
    # construction cost does not scale with bn.
    d = o - t

    row = lax.broadcasted_iota(jnp.int32, (1, H, W), 1)
    col = lax.broadcasted_iota(jnp.int32, (1, H, W), 2)
    m_top = (row > 0).astype(jnp.float32)        # zero wrapped first row
    m_bot = (row < H - 1).astype(jnp.float32)    # zero wrapped last row
    m_left = (col > 0).astype(jnp.float32)       # zero wrapped first column
    m_right = (col < W - 1).astype(jnp.float32)  # zero wrapped last column

    # x[i-1, j] and x[i+1, j] with zero fill at the image top/bottom.
    d_im1 = pltpu.roll(d, 1, axis=1) * m_top         # roll(+1)[i] == d[i-1]
    d_ip1 = pltpu.roll(d, H - 1, axis=1) * m_bot     # roll(H-1)[i] == d[i+1]
    rsum = d_im1 + d + d_ip1

    # rsum[i, j-1] and rsum[i, j+1] with zero fill at the left/right edges.
    r_jm1 = pltpu.roll(rsum, 1, axis=2) * m_left
    r_jp1 = pltpu.roll(rsum, W - 1, axis=2) * m_right
    box = r_jm1 + rsum + r_jp1

    e = 9.0 * d - box                        # == edge(o) - edge(t)
    bd_sum = jnp.sum(e * e)

    # Write the two partials into a lane-aligned (1, 8, 128) output tile.
    lane = lax.broadcasted_iota(jnp.int32, res_ref.shape, 2)
    res_ref[...] = jnp.where(lane == 0, bce_sum,
                             jnp.where(lane == 1, bd_sum, 0.0))


def _budget_for_device():
    """(per-input block byte budget, vmem_limit_bytes) per TPU generation."""
    try:
        kind = jax.devices()[0].device_kind.lower()
    except Exception:
        kind = ""
    if "v7" in kind:                       # 64 MiB VMEM / TensorCore
        return 2 << 20, 48 << 20
    if ("v5" in kind) or ("v6" in kind):   # 128 MiB VMEM
        return 4 << 20, 64 << 20
    # Unknown device (interpret mode / future gen): conservative v7x-safe.
    return 2 << 20, 48 << 20


def _pick_block_n(N, H, W, budget_bytes):
    """Images per block. Sizes by f32 element count (all in-kernel math is
    f32 regardless of the input dtype). Prefers an even number of grid steps
    (balanced v7x megacore sharding); for awkward N where no divisor comes
    close to the budget, returns a non-divisor bn plus a batch pad count."""
    per_img = H * W * 4                       # f32 bytes per image
    max_bn = int(max(1, min(N, budget_bytes // per_img)))
    divs = [d for d in range(1, max_bn + 1) if N % d == 0]
    dmax = max(divs)
    if max_bn < 2 or dmax * 2 > max_bn:
        # A divisor uses at least half the budget: no padding needed.
        even = [d for d in divs if (N // d) % 2 == 0 and 2 * d >= dmax]
        bn = max(even) if even else dmax
        return bn, N // bn, 0
    # Awkward N (e.g. prime): non-divisor block + batch padding in the wrapper.
    gn = pl.cdiv(N, max_bn)
    if gn > 1 and gn % 2:
        gn += 1                               # even grid for v7x balance
    bn = pl.cdiv(N, gn)
    return bn, gn, bn * gn - N


def bce_bd_loss(output, target, loss_weight, *, binary_target=False,
                max_block_bytes=None, vmem_limit_bytes=None):
    """output: (N, 1, H, W) probabilities in (0, 1); target: (N, H, W).

    Inputs may be float32 or bfloat16 (bf16 halves HBM traffic; all math is
    done in f32 inside the kernel). Set binary_target=True only when the
    target is an exact 0/1 mask (enables the 1-log fast path).
    """
    out2d = jnp.squeeze(output, axis=1)                   # output.squeeze(1)
    if not jnp.issubdtype(target.dtype, jnp.floating):    # target.float()
        target = target.astype(jnp.float32)

    N, H, W = out2d.shape
    dev_block, dev_vmem = _budget_for_device()
    budget = dev_block if max_block_bytes is None else max_block_bytes
    vmem_limit = dev_vmem if vmem_limit_bytes is None else vmem_limit_bytes

    bn, gn, pad = _pick_block_n(N, H, W, budget)
    if pad:
        # Padded images with o = 1 and t = 1 contribute exactly 0 to both the
        # BCE partial (t*log(1) == 0, (1-t)*log(0).clamp == 0) and the
        # boundary partial (d == 0 everywhere, conv does not cross batch).
        out2d = jnp.concatenate(
            [out2d, jnp.ones((pad, H, W), out2d.dtype)], axis=0)
        target = jnp.concatenate(
            [target, jnp.ones((pad, H, W), target.dtype)], axis=0)

    kernel = functools.partial(_bce_bd_block_kernel,
                               binary_target=binary_target)
    parts = pl.pallas_call(
        kernel,
        grid=(gn,),
        in_specs=[
            pl.BlockSpec((bn, H, W), lambda i: (i, 0, 0)),   # output block
            pl.BlockSpec((bn, H, W), lambda i: (i, 0, 0)),   # target block
        ],
        out_specs=pl.BlockSpec((1, 8, 128), lambda i: (i, 0, 0)),
        out_shape=jax.ShapeDtypeStruct((gn, 8, 128), jnp.float32),
        compiler_params=pltpu.CompilerParams(
            dimension_semantics=("parallel",),
            vmem_limit_bytes=vmem_limit),
    )(out2d, target)

    # Finalize: mean normalization + loss_weight mix over per-block partials.
    # (Both BCE mean and boundary-MSE mean divide by the same N*H*W.)
    lw = jnp.asarray(loss_weight, jnp.float32)
    n_elem = jnp.float32(N * H * W)
    bce_total = jnp.sum(parts[:, 0, 0])
    bd_total = jnp.sum(parts[:, 0, 1])
    return (bce_total * lw[0] + bd_total * lw[1]) / n_elem


def _reference(output, target, loss_weight):
    """Plain-JAX reference mirroring the PyTorch module (all f32)."""
    o = jnp.squeeze(output, axis=1).astype(jnp.float32)
    t = target.astype(jnp.float32)
    log_o = jnp.maximum(jnp.log(o), -100.0)
    log_1mo = jnp.maximum(jnp.log(1.0 - o), -100.0)
    loss_bce = jnp.mean(-(t * log_o + (1.0 - t) * log_1mo))

    w = jnp.asarray(_SOBEL).reshape(1, 1, 3, 3)

    def edge(x):
        return lax.conv_general_dilated(
            x[:, None, :, :], w, window_strides=(1, 1),
            padding=((1, 1), (1, 1)),
            dimension_numbers=("NCHW", "OIHW", "NCHW"),
            precision=lax.Precision.HIGHEST)

    diff = edge(o) - edge(t)
    loss_bd = jnp.mean(diff * diff)
    return loss_bce * loss_weight[0] + loss_bd * loss_weight[1]


if __name__ == "__main__":
    key = jax.random.PRNGKey(0)
    k1, k2, k3, k4 = jax.random.split(key, 4)
    lw = (1.0, 0.5)   # deterministic stand-in for the module's loss_weight

    # --- Test 1: f32, lane-aligned W, default budget -> bn=2, gn=2
    #     (exercises multi-image blocks and a multi-step "parallel" grid). ---
    N, H, W = 4, 16, 128
    out1 = jax.nn.sigmoid(jax.random.normal(k1, (N, 1, H, W), jnp.float32))
    tgt1 = (jax.random.uniform(k2, (N, H, W)) > 0.5).astype(jnp.float32)
    r1 = bce_bd_loss(out1, tgt1, lw)
    jax.block_until_ready(r1)
    np.testing.assert_allclose(np.asarray(r1),
                               np.asarray(_reference(out1, tgt1, lw)),
                               rtol=1e-4, atol=1e-5)

    # --- Test 2: non-128-aligned W, awkward N=3 (batch-padding path), soft
    #     labels (general two-log BCE), forced small block budget -> bn=2. ---
    N2, H2, W2 = 3, 16, 48
    out2 = jax.nn.sigmoid(jax.random.normal(k3, (N2, 1, H2, W2), jnp.float32))
    tgt2 = jax.random.uniform(k4, (N2, H2, W2), dtype=jnp.float32)
    r2 = bce_bd_loss(out2, tgt2, lw, max_block_bytes=2 * H2 * W2 * 4)
    jax.block_until_ready(r2)
    np.testing.assert_allclose(np.asarray(r2),
                               np.asarray(_reference(out2, tgt2, lw)),
                               rtol=1e-4, atol=1e-5)

    # --- Test 3: bf16 HBM inputs + binary-target fast path (1 log/elem). ---
    out3 = out1.astype(jnp.bfloat16)
    tgt3 = tgt1.astype(jnp.bfloat16)
    r3 = bce_bd_loss(out3, tgt3, lw, binary_target=True)
    jax.block_until_ready(r3)
    ref3 = _reference(out3.astype(jnp.float32), tgt3.astype(jnp.float32), lw)
    np.testing.assert_allclose(np.asarray(r3), np.asarray(ref3),
                               rtol=1e-3, atol=1e-3)

    print("KERNEL_OK")
</pallas_src>

<mosaic_0001>
module attributes {stable_mosaic.version = 11 : i64} {
  func.func @_bce_bd_block_kernel(%arg0: i32, %arg1: memref<2x16x128xf32, #tpu.memory_space<vmem>>, %arg2: memref<2x16x128xf32, #tpu.memory_space<vmem>>, %arg3: memref<1x8x128xf32, #tpu.memory_space<vmem>>) attributes {dimension_semantics = [#tpu.dimension_semantics<parallel>], iteration_bounds = array<i64: 2>, scalar_prefetch = 0 : i64, scratch_operands = 0 : i64, tpu.core_type = #tpu.core_type<tc>, window_params = [{transform_indices = @transform_0, window_bounds = array<i64: 2, 16, 128>}, {transform_indices = @transform_1, window_bounds = array<i64: 2, 16, 128>}, {transform_indices = @transform_2, window_bounds = array<i64: 1, 8, 128>}]} {
    %c0 = arith.constant 0 : index
    %c0_0 = arith.constant 0 : index
    %c0_1 = arith.constant 0 : index
    %0 = vector.load %arg1[%c0, %c0_0, %c0_1] : memref<2x16x128xf32, #tpu.memory_space<vmem>>, vector<2x16x128xf32>
    %c0_2 = arith.constant 0 : index
    %c0_3 = arith.constant 0 : index
    %c0_4 = arith.constant 0 : index
    %1 = vector.load %arg2[%c0_2, %c0_3, %c0_4] : memref<2x16x128xf32, #tpu.memory_space<vmem>>, vector<2x16x128xf32>
    %2 = math.log %0 : vector<2x16x128xf32>
    %cst = arith.constant -1.000000e+02 : f32
    %3 = vector.broadcast %cst : f32 to vector<2x16x128xf32>
    %4 = arith.maximumf %2, %3 : vector<2x16x128xf32>
    %cst_5 = arith.constant 1.000000e+00 : f32
    %5 = vector.broadcast %cst_5 : f32 to vector<2x16x128xf32>
    %6 = arith.subf %5, %0 : vector<2x16x128xf32>
    %7 = math.log %6 : vector<2x16x128xf32>
    %cst_6 = arith.constant -1.000000e+02 : f32
    %8 = vector.broadcast %cst_6 : f32 to vector<2x16x128xf32>
    %9 = arith.maximumf %7, %8 : vector<2x16x128xf32>
    %10 = arith.mulf %1, %4 : vector<2x16x128xf32>
    %cst_7 = arith.constant 1.000000e+00 : f32
    %11 = vector.broadcast %cst_7 : f32 to vector<2x16x128xf32>
    %12 = arith.subf %11, %1 : vector<2x16x128xf32>
    %13 = arith.mulf %12, %9 : vector<2x16x128xf32>
    %14 = arith.addf %10, %13 : vector<2x16x128xf32>
    %cst_8 = arith.constant 0.000000e+00 : f32
    %15 = vector.broadcast %cst_8 : f32 to vector<2x16x128xf32>
    %16 = arith.subf %15, %14 : vector<2x16x128xf32>
    %17 = vector.shape_cast %16 : vector<2x16x128xf32> to vector<1x2x16x128xf32>
    %cst_9 = arith.constant dense<0.000000e+00> : vector<1xf32>
    %18 = vector.multi_reduction <add>, %17, %cst_9 [1, 2, 3] : vector<1x2x16x128xf32> to vector<1xf32>
    %19 = vector.shape_cast %18 : vector<1xf32> to vector<1x1x1x1xf32>
    %20 = vector.extract %19[0, 0, 0, 0] : f32 from vector<1x1x1x1xf32>
    %21 = arith.subf %0, %1 : vector<2x16x128xf32>
    %22 = tpu.iota {dimensions = array<i32: 1>} : vector<1x16x128xi32>
    %23 = tpu.iota {dimensions = array<i32: 2>} : vector<1x16x128xi32>
    %c0_i32 = arith.constant 0 : i32
    %24 = vector.broadcast %c0_i32 : i32 to vector<1x16x128xi32>
    %25 = arith.cmpi sgt, %22, %24 : vector<1x16x128xi32>
    %26 = arith.extui %25 : vector<1x16x128xi1> to vector<1x16x128xi32>
    %27 = arith.sitofp %26 : vector<1x16x128xi32> to vector<1x16x128xf32>
    %c15_i32 = arith.constant 15 : i32
    %28 = vector.broadcast %c15_i32 : i32 to vector<1x16x128xi32>
    %29 = arith.cmpi slt, %22, %28 : vector<1x16x128xi32>
    %30 = arith.extui %29 : vector<1x16x128xi1> to vector<1x16x128xi32>
    %31 = arith.sitofp %30 : vector<1x16x128xi32> to vector<1x16x128xf32>
    %c0_i32_10 = arith.constant 0 : i32
    %32 = vector.broadcast %c0_i32_10 : i32 to vector<1x16x128xi32>
    %33 = arith.cmpi sgt, %23, %32 : vector<1x16x128xi32>
    %34 = arith.extui %33 : vector<1x16x128xi1> to vector<1x16x128xi32>
    %35 = arith.sitofp %34 : vector<1x16x128xi32> to vector<1x16x128xf32>
    %c127_i32 = arith.constant 127 : i32
    %36 = vector.broadcast %c127_i32 : i32 to vector<1x16x128xi32>
    %37 = arith.cmpi slt, %23, %36 : vector<1x16x128xi32>
    %38 = arith.extui %37 : vector<1x16x128xi1> to vector<1x16x128xi32>
    %39 = arith.sitofp %38 : vector<1x16x128xi32> to vector<1x16x128xf32>
    %c1_i32 = arith.constant 1 : i32
    %40 = tpu.dynamic_rotate %21 by %c1_i32 dim 1 : vector<2x16x128xf32>, i32 -> vector<2x16x128xf32>
    %41 = vector.broadcast %27 : vector<1x16x128xf32> to vector<2x16x128xf32>
    %42 = arith.mulf %40, %41 : vector<2x16x128xf32>
    %c15_i32_11 = arith.constant 15 : i32
    %43 = tpu.dynamic_rotate %21 by %c15_i32_11 dim 1 : vector<2x16x128xf32>, i32 -> vector<2x16x128xf32>
    %44 = vector.broadcast %31 : vector<1x16x128xf32> to vector<2x16x128xf32>
    %45 = arith.mulf %43, %44 : vector<2x16x128xf32>
    %46 = arith.addf %42, %21 : vector<2x16x128xf32>
    %47 = arith.addf %46, %45 : vector<2x16x128xf32>
    %c1_i32_12 = arith.constant 1 : i32
    %48 = tpu.dynamic_rotate %47 by %c1_i32_12 dim 2 : vector<2x16x128xf32>, i32 -> vector<2x16x128xf32>
    %49 = vector.broadcast %35 : vector<1x16x128xf32> to vector<2x16x128xf32>
    %50 = arith.mulf %48, %49 : vector<2x16x128xf32>
    %c127_i32_13 = arith.constant 127 : i32
    %51 = tpu.dynamic_rotate %47 by %c127_i32_13 dim 2 : vector<2x16x128xf32>, i32 -> vector<2x16x128xf32>
    %52 = vector.broadcast %39 : vector<1x16x128xf32> to vector<2x16x128xf32>
    %53 = arith.mulf %51, %52 : vector<2x16x128xf32>
    %54 = arith.addf %50, %47 : vector<2x16x128xf32>
    %55 = arith.addf %54, %53 : vector<2x16x128xf32>
    %cst_14 = arith.constant 9.000000e+00 : f32
    %56 = vector.broadcast %cst_14 : f32 to vector<2x16x128xf32>
    %57 = arith.mulf %56, %21 : vector<2x16x128xf32>
    %58 = arith.subf %57, %55 : vector<2x16x128xf32>
    %59 = arith.mulf %58, %58 : vector<2x16x128xf32>
    %60 = vector.shape_cast %59 : vector<2x16x128xf32> to vector<1x2x16x128xf32>
    %cst_15 = arith.constant dense<0.000000e+00> : vector<1xf32>
    %61 = vector.multi_reduction <add>, %60, %cst_15 [1, 2, 3] : vector<1x2x16x128xf32> to vector<1xf32>
    %62 = vector.shape_cast %61 : vector<1xf32> to vector<1x1x1x1xf32>
    %63 = vector.extract %62[0, 0, 0, 0] : f32 from vector<1x1x1x1xf32>
    %64 = tpu.iota {dimensions = array<i32: 2>} : vector<1x8x128xi32>
    %c0_i32_16 = arith.constant 0 : i32
    %65 = vector.broadcast %c0_i32_16 : i32 to vector<1x8x128xi32>
    %66 = arith.cmpi eq, %64, %65 : vector<1x8x128xi32>
    %c1_i32_17 = arith.constant 1 : i32
    %67 = vector.broadcast %c1_i32_17 : i32 to vector<1x8x128xi32>
    %68 = arith.cmpi eq, %64, %67 : vector<1x8x128xi32>
    %cst_18 = arith.constant 0.000000e+00 : f32
    %69 = vector.broadcast %63 : f32 to vector<1x8x128xf32>
    %70 = vector.broadcast %cst_18 : f32 to vector<1x8x128xf32>
    %71 = arith.select %68, %69, %70 : vector<1x8x128xi1>, vector<1x8x128xf32>
    %72 = vector.broadcast %20 : f32 to vector<1x8x128xf32>
    %73 = arith.select %66, %72, %71 : vector<1x8x128xi1>, vector<1x8x128xf32>
    %c0_19 = arith.constant 0 : index
    %c0_20 = arith.constant 0 : index
    %c0_21 = arith.constant 0 : index
    %74 = vector.load %arg3[%c0_19, %c0_20, %c0_21] : memref<1x8x128xf32, #tpu.memory_space<vmem>>, vector<1x8x128xf32>
    tpu.vector_store %arg3[%c0_19, %c0_20, %c0_21], %73 {strides = array<i32>} : memref<1x8x128xf32, #tpu.memory_space<vmem>>, vector<1x8x128xf32>,
    return
  }
  func.func @transform_0(%arg0: i32) -> (i32, i32, i32) {
    %c0_i32 = arith.constant 0 : i32
    %c0_i32_0 = arith.constant 0 : i32
    %c0_i32_1 = arith.constant 0 : i32
    return %arg0, %c0_i32, %c0_i32_0 : i32, i32, i32
  }
  func.func @transform_1(%arg0: i32) -> (i32, i32, i32) {
    %c0_i32 = arith.constant 0 : i32
    %c0_i32_0 = arith.constant 0 : i32
    %c0_i32_1 = arith.constant 0 : i32
    return %arg0, %c0_i32, %c0_i32_0 : i32, i32, i32
  }
  func.func @transform_2(%arg0: i32) -> (i32, i32, i32) {
    %c0_i32 = arith.constant 0 : i32
    %c0_i32_0 = arith.constant 0 : i32
    %c0_i32_1 = arith.constant 0 : i32
    return %arg0, %c0_i32, %c0_i32_0 : i32, i32, i32
  }
}

</mosaic_0001>

<llo_original>
// kernel: tpu_custom_call.1
$region0: #{tpu_custom_call.1}
  #allocation0 [shape = 'u32[]', space=smem, size = 0x4, offset = 0x4, fixed_abs, tag = 'smem constant byte address 0x4 - core index']
  #allocation1 [shape = 'u32[144,128]{1,0:T(1,128)}', space=vmem, size = 0x12000, scoped, tag = 'internal scratch']
  %s0 = inlined_call_operand.hbm [shape: f32[4,16,128], index: 0, kind: input, shape index: {}]
  %s1 = inlined_call_operand.hbm [shape: f32[4,16,128], index: 1, kind: input, shape index: {}]
  %s2 = inlined_call_operand.hbm [shape: f32[2,8,128], index: 2, kind: output, shape index: {}]
  %s3 = sld [smem:[#allocation0]]
  $region49: #{tpu_custom_call.1} parent=0
    _
  %s5 = ssub.s32 1, %s3
  %s6 = scalar_select 0, %s5, %s3
  $region1: #{tpu_custom_call.1} parent=0
    #allocation2 [shape = 'u8[32768]{0}', space=vmem, size = 0x8000, scoped, tag = 'input window, operand 0']
    #allocation3 [shape = 's32[2]{0}', space=sflag, size = 0x8, scoped, tag = 'scoped memory for tpu_custom_call.1']
    #allocation4 [shape = 's32[2]{0}', space=sflag, size = 0x8, scoped, tag = 'scoped memory for tpu_custom_call.1']
    #allocation5 [shape = 'u8[32768]{0}', space=vmem, size = 0x8000, scoped, tag = 'input window, operand 1']
    #allocation6 [shape = 's32[2]{0}', space=sflag, size = 0x8, scoped, tag = 'scoped memory for tpu_custom_call.1']
    #allocation7 [shape = 'u8[8192]{0}', space=vmem, size = 0x2000, scoped, tag = 'output window, operand 0']
    %7 = vsyncpa [#allocation3], 0
    %s8 = scalar_lea.sflag [#allocation3], 1
    %9 = vsyncpa %s8, 0
    %10 = vsyncpa [#allocation6], 0
    %s11 = scalar_lea.sflag [#allocation6], 1
    %12 = vsyncpa %s11, 0
    %13 = vsyncpa [#allocation4], 0
    %s14 = scalar_lea.sflag [#allocation4], 1
    %15 = vsyncpa %s14, 0
    loop: start=0, step=1, limit=4
    $region2: #{tpu_custom_call.1} parent=1 // loop_pre_header
      _
    $region3: #{tpu_custom_call.1} parent=1 // loop_header
      %s17 = sphi 0, %s21
      %p18 = scmp.ge.s32.totalorder %s17, 4
      %s27 = sphi 0, %s29
      %s30 = sphi 0, %s27
      %s31 = sphi 0, %s30
      %s47 = sphi 0, %s31
      %s53 = sphi 0, %s55
      %s56 = sphi 0, %s53
      %s57 = sphi 0, %s56
      %s73 = sphi 0, %s57
      %s79 = sphi 0, %s81
      %s82 = sphi 0, %s79
      %s83 = sphi 0, %s82
      %s99 = sphi 0, %s83
    $region4: #{tpu_custom_call.1} parent=1 // loop_header_branch
      %20 = sbr.rel (%p18) target = $region8
    $region5: #{tpu_custom_call.1} parent=1 // loop_body
      %s22 = ssub.s32 %s17, 1
      %s23 = ssub.s32 %s17, 2
      %s24 = sadd.s32 %s17, 1
      %s25 = ssub.s32 %s17, %s24
      %p26 = scmp.eq.s32.totalorder %s25, 0
      %s28 = sadd.s32 %s27, 1
      %s29 = scalar_select %p26, %s27, %s28
      %p32 = pneg %p26
      %p33 = scmp.eq.s32.totalorder %s17, 1
      %p34 = por %p32, %p33
      %p35 = scmp.ne.s32.totalorder %s27, %s30
      %p36 = scmp.eq.s32.totalorder %s17, 0
      %p37 = por %p35, %p36
      %p38 = scmp.ne.s32.totalorder %s27, %s30
      %p39 = scmp.eq.s32.totalorder %s22, 1
      %p40 = por %p38, %p39
      %p41 = scmp.ne.s32.totalorder %s30, %s31
      %p42 = scmp.eq.s32.totalorder %s22, 0
      %p43 = por %p41, %p42
      %p44 = scmp.ne.s32.totalorder %s30, %s31
      %p45 = scmp.eq.s32.totalorder %s23, 1
      %p46 = por %p44, %p45
      %p48 = scmp.ne.s32.totalorder %s31, %s47
      %p49 = scmp.eq.s32.totalorder %s23, 0
      %p50 = por %p48, %p49
      %s51 = ssub.s32 %s17, %s24
      %p52 = scmp.eq.s32.totalorder %s51, 0
      %s54 = sadd.s32 %s53, 1
      %s55 = scalar_select %p52, %s53, %s54
      %p58 = pneg %p52
      %p59 = scmp.eq.s32.totalorder %s17, 1
      %p60 = por %p58, %p59
      %p61 = scmp.ne.s32.totalorder %s53, %s56
      %p62 = scmp.eq.s32.totalorder %s17, 0
      %p63 = por %p61, %p62
      %p64 = scmp.ne.s32.totalorder %s53, %s56
      %p65 = scmp.eq.s32.totalorder %s22, 1
      %p66 = por %p64, %p65
      %p67 = scmp.ne.s32.totalorder %s56, %s57
      %p68 = scmp.eq.s32.totalorder %s22, 0
      %p69 = por %p67, %p68
      %p70 = scmp.ne.s32.totalorder %s56, %s57
      %p71 = scmp.eq.s32.totalorder %s23, 1
      %p72 = por %p70, %p71
      %p74 = scmp.ne.s32.totalorder %s57, %s73
      %p75 = scmp.eq.s32.totalorder %s23, 0
      %p76 = por %p74, %p75
      %s77 = ssub.s32 %s17, %s24
      %p78 = scmp.eq.s32.totalorder %s77, 0
      %s80 = sadd.s32 %s79, 1
      %s81 = scalar_select %p78, %s79, %s80
      %p84 = pneg %p78
      %p85 = scmp.eq.s32.totalorder %s17, 1
      %p86 = por %p84, %p85
      %p87 = scmp.ne.s32.totalorder %s79, %s82
      %p88 = scmp.eq.s32.totalorder %s17, 0
      %p89 = por %p87, %p88
      %p90 = scmp.ne.s32.totalorder %s79, %s82
      %p91 = scmp.eq.s32.totalorder %s22, 1
      %p92 = por %p90, %p91
      %p93 = scmp.ne.s32.totalorder %s82, %s83
      %p94 = scmp.eq.s32.totalorder %s22, 0
      %p95 = por %p93, %p94
      %p96 = scmp.ne.s32.totalorder %s82, %s83
      %p97 = scmp.eq.s32.totalorder %s23, 1
      %p98 = por %p96, %p97
      %p100 = scmp.ne.s32.totalorder %s83, %s99
      %p101 = scmp.eq.s32.totalorder %s23, 0
      %p102 = por %p100, %p101
      %p103 = scmp.le.s32.totalorder 1, %s17
      %p104 = scmp.lt.s32.totalorder %s17, 3
      %p105 = pnand %p103, %p104
      %p106 = pneg %p105
      // Predicated region
      $region9: #{tpu_custom_call.1} parent=5 // pred_check
        _
      $region10: #{tpu_custom_call.1} parent=5 // pred_check_branch
        %108 = sbr.rel (%p105) target = $region12
      $region11: #{tpu_custom_call.1} parent=5 // pred_region
        %s109 = ssub.s32 %s17, 1
      $region12: #{tpu_custom_call.1} parent=5 // pred_fallthru
        _
      %p110 = scmp.lt.s32.totalorder %s17, 2
      // Predicated region
      $region13: #{tpu_custom_call.1} parent=5 // pred_check
        %p111 = pneg %p110
      $region14: #{tpu_custom_call.1} parent=5 // pred_check_branch
        %113 = sbr.rel (%p111) target = $region16
      $region15: #{tpu_custom_call.1} parent=5 // pred_region
        // Predicated region
        $region17: #{tpu_custom_call.1} parent=15 // pred_check
          %p114 = pneg %p37
        $region18: #{tpu_custom_call.1} parent=15 // pred_check_branch
          %116 = sbr.rel (%p114) target = $region20
        $region19: #{tpu_custom_call.1} parent=15 // pred_region
          %s117 = sand.u32 %s27, 1
          %s118 = scalar_lea.sflag [#allocation3], %s117
          %s119 = sand.u32 %s27, 1
          %s120 = smul.addr %s119, 32
          %s121 = scalar_lea.vmem [#allocation2], %s120
          %s122 = smul.u32 2, %s17
          %s124 = ssub.s32 512, 512
          %125 = vsyncadd %s118, %s124
          %s126 = smul.addr %s122, 2
          %s127 = smul.addr %s126, 128
          %s128 = scalar_lea.hbm %s0, %s127
          %s129 = sshll.u32 %s121, 4
          %s130 = int_to_ptr.vmem [resolvable:$true] %s129
          %135 = dma.hbm_to_vmem [thread:$0]  %s128, 512, %s130, %s118, 128, 128, 8
        $region20: #{tpu_custom_call.1} parent=15 // pred_fallthru
          _
        // Predicated region
        $region21: #{tpu_custom_call.1} parent=15 // pred_check
          %p136 = pneg %p63
        $region22: #{tpu_custom_call.1} parent=15 // pred_check_branch
          %138 = sbr.rel (%p136) target = $region24
        $region23: #{tpu_custom_call.1} parent=15 // pred_region
          %s139 = sand.u32 %s53, 1
          %s140 = scalar_lea.sflag [#allocation6], %s139
          %s141 = sand.u32 %s53, 1
          %s142 = smul.addr %s141, 32
          %s143 = scalar_lea.vmem [#allocation5], %s142
          %s144 = smul.u32 2, %s17
          %s146 = ssub.s32 512, 512
          %147 = vsyncadd %s140, %s146
          %s148 = smul.addr %s144, 2
          %s149 = smul.addr %s148, 128
          %s150 = scalar_lea.hbm %s1, %s149
          %s151 = sshll.u32 %s143, 4
          %s152 = int_to_ptr.vmem [resolvable:$true] %s151
          %157 = dma.hbm_to_vmem [thread:$0]  %s150, 512, %s152, %s140, 128, 128, 8
        $region24: #{tpu_custom_call.1} parent=15 // pred_fallthru
          _
      $region16: #{tpu_custom_call.1} parent=5 // pred_fallthru
        _
      %p158 = scmp.le.s32.totalorder 1, %s17
      %p159 = scmp.lt.s32.totalorder %s17, 3
      %p160 = pnand %p158, %p159
      %p161 = pneg %p160
      // Predicated region
      $region25: #{tpu_custom_call.1} parent=5 // pred_check
        _
      $region26: #{tpu_custom_call.1} parent=5 // pred_check_branch
        %163 = sbr.rel (%p160) target = $region28
      $region27: #{tpu_custom_call.1} parent=5 // pred_region
        %s164 = ssub.s32 %s17, 1
        %s165 = sand.u32 %s30, 1
        %s166 = scalar_lea.sflag [#allocation3], %s165
        %s167 = sand.u32 %s30, 1
        %s168 = smul.addr %s167, 32
        %s169 = scalar_lea.vmem [#allocation2], %s168
        // Predicated region
        $region29: #{tpu_custom_call.1} parent=27 // pred_check
          %p170 = pneg %p43
        $region30: #{tpu_custom_call.1} parent=27 // pred_check_branch
          %172 = sbr.rel (%p170) target = $region32
        $region31: #{tpu_custom_call.1} parent=27 // pred_region
          %173 = dma.done %s166, 512
        $region32: #{tpu_custom_call.1} parent=27 // pred_fallthru
          _
        %s174 = sand.u32 %s56, 1
        %s175 = scalar_lea.sflag [#allocation6], %s174
        %s176 = sand.u32 %s56, 1
        %s177 = smul.addr %s176, 32
        %s178 = scalar_lea.vmem [#allocation5], %s177
        // Predicated region
        $region33: #{tpu_custom_call.1} parent=27 // pred_check
          %p179 = pneg %p69
        $region34: #{tpu_custom_call.1} parent=27 // pred_check_branch
          %181 = sbr.rel (%p179) target = $region36
        $region35: #{tpu_custom_call.1} parent=27 // pred_region
          %182 = dma.done %s175, 512
        $region36: #{tpu_custom_call.1} parent=27 // pred_fallthru
          _
        %s183 = sand.u32 %s30, 1
        %s184 = scalar_lea.sflag [#allocation3], %s183
        %s185 = sand.u32 %s30, 1
        %s186 = smul.addr %s185, 32
        %s187 = scalar_lea.vmem [#allocation2], %s186
        %p188 = pneg %p43
        %p189 = pneg %p40
        %s190 = sand.u32 %s56, 1
        %s191 = scalar_lea.sflag [#allocation6], %s190
        %s192 = sand.u32 %s56, 1
        %s193 = smul.addr %s192, 32
        %s194 = scalar_lea.vmem [#allocation5], %s193
        %p195 = pneg %p69
        %p196 = pneg %p66
        %p197 = pneg %p95
        %p198 = pneg %p92
        %s199 = sand.u32 %s82, 1
        %s200 = scalar_lea.sflag [#allocation4], %s199
        %s201 = sand.u32 %s82, 1
        %s202 = smul.addr %s201, 8
        %s203 = scalar_lea.vmem [#allocation7], %s202
        %s204 = smul.u32 2, %s22
        %s205 = smul.u32 2, %s22
        %v206 = vld [vmem:[%s169] sm:$0xff]
        %v207 = vld [vmem:[%s169 + $0x8] sm:$0xff]
        %v208 = vld [vmem:[%s169 + $0x10] sm:$0xff]
        %v209 = vld [vmem:[%s169 + $0x18] sm:$0xff]
        %v210 = vld [vmem:[%s178] sm:$0xff]
        %v211 = vld [vmem:[%s178 + $0x8] sm:$0xff]
        %v212 = vld [vmem:[%s178 + $0x10] sm:$0xff]
        %v213 = vld [vmem:[%s178 + $0x18] sm:$0xff]
        %v214 = vlog2.pop %v206
        %v215 = vmul.f32 %v214, 0.6931472
        %v216 = vlog2.pop %v207
        %v217 = vmul.f32 %v216, 0.6931472
        %v218 = vlog2.pop %v208
        %v219 = vmul.f32 %v218, 0.6931472
        %v220 = vlog2.pop %v209
        %v221 = vmul.f32 %v220, 0.6931472
        %v222 = vmax.f32 %v215, -100.0
        %v223 = vmax.f32 %v217, -100.0
        %v224 = vmax.f32 %v219, -100.0
        %v225 = vmax.f32 %v221, -100.0
        %v226 = vsub.f32 1.0, %v206
        %v227 = vsub.f32 1.0, %v207
        %v228 = vsub.f32 1.0, %v208
        %v229 = vsub.f32 1.0, %v209
        %v230 = vlog2.pop %v226
        %v231 = vmul.f32 %v230, 0.6931472
        %v232 = vlog2.pop %v227
        %v233 = vmul.f32 %v232, 0.6931472
        %v234 = vlog2.pop %v228
        %v235 = vmul.f32 %v234, 0.6931472
        %v236 = vlog2.pop %v229
        %v237 = vmul.f32 %v236, 0.6931472
        %v238 = vmax.f32 %v231, -100.0
        %v239 = vmax.f32 %v233, -100.0
        %v240 = vmax.f32 %v235, -100.0
        %v241 = vmax.f32 %v237, -100.0
        %v242 = vmul.f32 %v210, %v222
        %v243 = vmul.f32 %v211, %v223
        %v244 = vmul.f32 %v212, %v224
        %v245 = vmul.f32 %v213, %v225
        %v246 = vsub.f32 1.0, %v210
        %v247 = vsub.f32 1.0, %v211
        %v248 = vsub.f32 1.0, %v212
        %v249 = vsub.f32 1.0, %v213
        %v250 = vmul.f32 %v246, %v238
        %v251 = vmul.f32 %v247, %v239
        %v252 = vmul.f32 %v248, %v240
        %v253 = vmul.f32 %v249, %v241
        %v254 = vadd.f32 %v242, %v250
        %v255 = vadd.f32 %v243, %v251
        %v256 = vadd.f32 %v244, %v252
        %v257 = vadd.f32 %v245, %v253
        %v258 = vsub.f32 0.0, %v254
        %v259 = vsub.f32 0.0, %v255
        %v260 = vsub.f32 0.0, %v256
        %v261 = vsub.f32 0.0, %v257
        %v262 = vadd.f32 %v258, %v259
        %v263 = vadd.f32 %v262, %v260
        %v264 = vadd.f32 %v263, %v261
        %265 = vadd.xlane.f32.xlu0 %v264
        %v266 = vpop.xlane.xlu0 %265
        %v267 = vrot.slane %v266, 4
        %v268 = vadd.f32 %v266, %v267
        %v269 = vrot.slane %v268, 2
        %v270 = vadd.f32 %v268, %v269
        %v271 = vrot.slane %v270, 1
        %v272 = vadd.f32 %v270, %v271
        %s273 = vtos %v272
        %v274 = vsub.f32 %v206, %v210
        %v275 = vsub.f32 %v207, %v211
        %v276 = vsub.f32 %v208, %v212
        %v277 = vsub.f32 %v209, %v213
        %v278 = vlaneseq
        %v279 = vshrl.u32 %v278, 7
        %v280 = vadd.s32 %v279, 8
        %v281 = vlaneseq
        %v282 = vand.u32 %v281, 127
        %vm283 = vcmp.gt.s32.totalorder %v279, 0
        %vm284 = vcmp.gt.s32.totalorder %v280, 0
        %v285 = vsel %vm283, 1, 0
        %v286 = vsel %vm284, 1, 0
        %v287 = vcvt.s32.f32 %v285
        %v288 = vcvt.s32.f32 %v286
        %vm289 = vcmp.lt.s32.totalorder %v279, 15
        %vm290 = vcmp.lt.s32.totalorder %v280, 15
        %v291 = vsel %vm289, 1, 0
        %v292 = vsel %vm290, 1, 0
        %v293 = vcvt.s32.f32 %v291
        %v294 = vcvt.s32.f32 %v292
        %vm295 = vcmp.gt.s32.totalorder %v282, 0
        %v296 = vsel %vm295, 1, 0
        %v297 = vcvt.s32.f32 %v296
        %vm298 = vcmp.lt.s32.totalorder %v282, 127
        %v299 = vsel %vm298, 1, 0
        %v300 = vcvt.s32.f32 %v299
        %v301 = vrot.slane %v274, 7
        %v302 = vrot.slane %v276, 7
        %v303 = vrot.slane %v275, 7
        %v304 = vrot.slane %v277, 7
        %vm305 = vcmp.lt.s32.totalorder %v279, 1
        %v306 = vsel %vm305, %v301, %v303
        %v307 = vsel %vm305, %v302, %v304
        %v308 = vsel %vm305, %v303, %v301
        %v309 = vsel %vm305, %v304, %v302
        %v310 = vmul.f32 %v308, %v287
        %v311 = vmul.f32 %v306, %v288
        %v312 = vmul.f32 %v309, %v287
        %v313 = vmul.f32 %v307, %v288
        %v314 = vrot.slane %v274, 1
        %v315 = vrot.slane %v276, 1
        %v316 = vrot.slane %v275, 1
        %v317 = vrot.slane %v277, 1
        %vm318 = vcmp.lt.s32.totalorder %v279, 7
        %v319 = vsel %vm318, %v314, %v316
        %v320 = vsel %vm318, %v315, %v317
        %v321 = vsel %vm318, %v316, %v314
        %v322 = vsel %vm318, %v317, %v315
        %v323 = vmul.f32 %v319, %v293
        %v324 = vmul.f32 %v321, %v294
        %v325 = vmul.f32 %v320, %v293
        %v326 = vmul.f32 %v322, %v294
        %v327 = vadd.f32 %v310, %v274
        %v328 = vadd.f32 %v311, %v275
        %v329 = vadd.f32 %v312, %v276
        %v330 = vadd.f32 %v313, %v277
        %v331 = vadd.f32 %v327, %v323
        %v332 = vadd.f32 %v328, %v324
        %v333 = vadd.f32 %v329, %v325
        %v334 = vadd.f32 %v330, %v326
        %335 = vrot.lane.b32.xlu0 %v331, 1
        %v336 = vpop.permute.xlu0 %335
        %337 = vrot.lane.b32.xlu0 %v332, 1
        %v338 = vpop.permute.xlu0 %337
        %339 = vrot.lane.b32.xlu0 %v333, 1
        %v340 = vpop.permute.xlu0 %339
        %341 = vrot.lane.b32.xlu0 %v334, 1
        %v342 = vpop.permute.xlu0 %341
        %v343 = vmul.f32 %v336, %v297
        %v344 = vmul.f32 %v338, %v297
        %v345 = vmul.f32 %v340, %v297
        %v346 = vmul.f32 %v342, %v297
        %347 = vrot.lane.b32.xlu0 %v331, 127
        %v348 = vpop.permute.xlu0 %347
        %349 = vrot.lane.b32.xlu0 %v332, 127
        %v350 = vpop.permute.xlu0 %349
        %351 = vrot.lane.b32.xlu0 %v333, 127
        %v352 = vpop.permute.xlu0 %351
        %353 = vrot.lane.b32.xlu0 %v334, 127
        %v354 = vpop.permute.xlu0 %353
        %v355 = vmul.f32 %v348, %v300
        %v356 = vmul.f32 %v350, %v300
        %v357 = vmul.f32 %v352, %v300
        %v358 = vmul.f32 %v354, %v300
        %v359 = vadd.f32 %v343, %v331
        %v360 = vadd.f32 %v344, %v332
        %v361 = vadd.f32 %v345, %v333
        %v362 = vadd.f32 %v346, %v334
        %v363 = vadd.f32 %v359, %v355
        %v364 = vadd.f32 %v360, %v356
        %v365 = vadd.f32 %v361, %v357
        %v366 = vadd.f32 %v362, %v358
        %v367 = vmul.f32 %v274, 9.0
        %v368 = vmul.f32 %v275, 9.0
        %v369 = vmul.f32 %v276, 9.0
        %v370 = vmul.f32 %v277, 9.0
        %v371 = vsub.f32 %v367, %v363
        %v372 = vsub.f32 %v368, %v364
        %v373 = vsub.f32 %v369, %v365
        %v374 = vsub.f32 %v370, %v366
        %v375 = vmul.f32 %v371, %v371
        %v376 = vmul.f32 %v372, %v372
        %v377 = vmul.f32 %v373, %v373
        %v378 = vmul.f32 %v374, %v374
        %v379 = vadd.f32 %v375, %v376
        %v380 = vadd.f32 %v379, %v377
        %v381 = vadd.f32 %v380, %v378
        %382 = vadd.xlane.f32.xlu0 %v381
        %v383 = vpop.xlane.xlu0 %382
        %v384 = vrot.slane %v383, 4
        %v385 = vadd.f32 %v383, %v384
        %v386 = vrot.slane %v385, 2
        %v387 = vadd.f32 %v385, %v386
        %v388 = vrot.slane %v387, 1
        %v389 = vadd.f32 %v387, %v388
        %s390 = vtos %v389
        %vm391 = vcmp.eq.s32.totalorder %v282, 0
        %vm392 = vcmp.eq.s32.totalorder %v282, 1
        %v393 = vstv %s390
        %v394 = vsel %vm392, %v393, 0.0
        %v395 = vstv %s273
        %v396 = vsel %vm391, %v395, %v394
        %397 = vst [vmem:[%s203] sm:$0xff] %v396
        %s398 = sand.u32 %s82, 1
        %s399 = scalar_lea.sflag [#allocation4], %s398
        %s400 = sand.u32 %s82, 1
        %s401 = smul.addr %s400, 8
        %s402 = scalar_lea.vmem [#allocation7], %s401
        // Predicated region
        $region37: #{tpu_custom_call.1} parent=27 // pred_check
          %p403 = pneg %p92
        $region38: #{tpu_custom_call.1} parent=27 // pred_check_branch
          %405 = sbr.rel (%p403) target = $region40
        $region39: #{tpu_custom_call.1} parent=27 // pred_region
          %s407 = ssub.s32 128, 128
          %408 = vsyncadd %s399, %s407
          %s409 = smul.addr %s22, 128
          %s410 = scalar_lea.hbm %s2, %s409
          %s412 = sshll.u32 %s402, 4
          %s413 = int_to_ptr.vmem [resolvable:$true] %s412
          %415 = dma.vmem_to_hbm [thread:$0]  %s413, 128, %s410, %s399
        $region40: #{tpu_custom_call.1} parent=27 // pred_fallthru
          _
      $region28: #{tpu_custom_call.1} parent=5 // pred_fallthru
        _
      %p416 = scmp.le.s32.totalorder 2, %s17
      // Predicated region
      $region41: #{tpu_custom_call.1} parent=5 // pred_check
        %p417 = pneg %p416
      $region42: #{tpu_custom_call.1} parent=5 // pred_check_branch
        %419 = sbr.rel (%p417) target = $region44
      $region43: #{tpu_custom_call.1} parent=5 // pred_region
        %s420 = ssub.s32 %s17, 2
        // Predicated region
        $region45: #{tpu_custom_call.1} parent=43 // pred_check
          %p421 = pneg %p98
        $region46: #{tpu_custom_call.1} parent=43 // pred_check_branch
          %423 = sbr.rel (%p421) target = $region48
        $region47: #{tpu_custom_call.1} parent=43 // pred_region
          %s424 = sand.u32 %s83, 1
          %s425 = scalar_lea.sflag [#allocation4], %s424
          %s426 = sand.u32 %s83, 1
          %s427 = smul.addr %s426, 8
          %s428 = scalar_lea.vmem [#allocation7], %s427
          %429 = dma.done %s425, 128
        $region48: #{tpu_custom_call.1} parent=43 // pred_fallthru
          _
      $region44: #{tpu_custom_call.1} parent=5 // pred_fallthru
        _
    $region6: #{tpu_custom_call.1} parent=1 // loop_footer
      %s21 = sadd.s32 1, %s17
    $region7: #{tpu_custom_call.1} parent=1 // loop_footer_branch
      %16 = sbr.rel target = $region3
    $region8: #{tpu_custom_call.1} parent=1 // loop_exit
      _
    %430 = vsyncpa [#allocation3], 1
    %s431 = scalar_lea.sflag [#allocation3], 1
    %432 = vsyncpa %s431, 1
    %433 = vsyncpa [#allocation6], 1
    %s434 = scalar_lea.sflag [#allocation6], 1
    %435 = vsyncpa %s434, 1
    %436 = vsyncpa [#allocation4], 1
    %s437 = scalar_lea.sflag [#allocation4], 1
    %438 = vsyncpa %s437, 1

</llo_original>
